<compile_context>
chip_gen: v7x
topology: tpu7x:2x2x1
jax: 0.10.0
libtpu: 0.0.40
codegen_flags: <defaults>
</compile_context>

<pallas_src>
import functools

import numpy as np
import jax
import jax.numpy as jnp
from jax import lax
from jax.experimental import pallas as pl
from jax.experimental.pallas import tpu as pltpu


# ----------------------------------------------------------------------------
# Host-side direction numbers (Joe & Kuo "new-joe-kuo-6" table prefix, the same
# table PyTorch's SobolEngine is initialized from).
# Entry k describes dimension k+2: (s, a, (m_1, ..., m_s)).
# ----------------------------------------------------------------------------
_JOE_KUO_NEW6 = (
    (1, 0, (1,)),                       # d = 2
    (2, 1, (1, 3)),                     # d = 3
    (3, 1, (1, 3, 1)),                  # d = 4
    (3, 2, (1, 1, 1)),                  # d = 5
    (4, 1, (1, 1, 3, 3)),               # d = 6
    (4, 4, (1, 3, 5, 13)),              # d = 7
    (5, 2, (1, 1, 5, 5, 17)),           # d = 8
    (5, 4, (1, 1, 5, 5, 5)),            # d = 9
    (5, 7, (1, 1, 7, 11, 19)),          # d = 10
    (5, 11, (1, 1, 5, 1, 1)),           # d = 11
    (5, 13, (1, 1, 1, 3, 11)),          # d = 12
    (5, 14, (1, 3, 5, 5, 31)),          # d = 13
    (6, 1, (1, 3, 3, 9, 7, 49)),        # d = 14
    (6, 13, (1, 1, 1, 15, 21, 21)),     # d = 15
    (6, 16, (1, 3, 1, 13, 27, 49)),     # d = 16
    (6, 19, (1, 1, 1, 15, 7, 5)),       # d = 17
    (6, 22, (1, 3, 1, 15, 13, 25)),     # d = 18
    (6, 25, (1, 1, 5, 5, 19, 61)),      # d = 19
    (7, 1, (1, 3, 7, 11, 23, 15, 103)), # d = 20
)
_MAX_DIM = len(_JOE_KUO_NEW6) + 1       # 21 supported Sobol dimensions
_LANE = 128                             # lane width / padded dim
_MAX_BITWIDTH = 24                      # int32 iota / host shifts stay exact
_PALLAS_MIN_SEQ_LEN = 8192              # below this, host build + H2D is faster


def _round_up(x, m):
    return (x + m - 1) // m * m


def _direction_numbers(dim, bitwidth):
    """(bitwidth, dim) int32, D[j, d] = m_{j+1}^{(d)} << (bitwidth - 1 - j).

    XOR-accumulating the rows selected by the Gray-code bits of the point index
    yields exactly floor(sobol_point * 2**bitwidth) (truncation commutes with
    the carry-free XOR construction).
    """
    if dim > _MAX_DIM:
        # TODO(synk): extend _JOE_KUO_NEW6 with more rows of the Joe-Kuo table
        # to support dim > 21.
        raise ValueError(f"dim={dim} > {_MAX_DIM}: extend _JOE_KUO_NEW6.")
    L = bitwidth
    D = np.zeros((L, dim), dtype=np.int64)
    # Dimension 1: van der Corput sequence, m_j = 1 for all j.
    D[:, 0] = 1 << (L - 1 - np.arange(L))
    for d in range(1, dim):
        s, a, m_init = _JOE_KUO_NEW6[d - 1]
        m = list(m_init)
        for k in range(s, L):  # exact integer primitive-polynomial recurrence
            new_m = m[k - s] ^ (m[k - s] << s)
            for t in range(1, s):
                if (a >> (s - 1 - t)) & 1:
                    new_m ^= m[k - t] << t
            m.append(new_m)
        for j in range(L):
            D[j, d] = m[j] << (L - 1 - j)
    return D.astype(np.int32)


# ----------------------------------------------------------------------------
# Pallas kernel: one (row_tile, 128) slab of the Sobol integer table.
# ----------------------------------------------------------------------------
def _sobol_table_kernel(dirs_ref, out_ref):
    """dirs_ref: (bitwidth, dim_tile) int32 pre-scaled direction numbers
       out_ref : (row_tile, dim_tile) output slab (cast at the final store)."""
    row_tile, dim_tile = out_ref.shape
    bitwidth = dirs_ref.shape[0]

    # Global row index of this slab: grid axis 1 tiles seq_len.
    row_base = pl.program_id(1) * row_tile
    row = row_base + lax.broadcasted_iota(jnp.int32, (row_tile, dim_tile), 0)
    gray = row ^ (row >> 1)                       # Gray code of the point index

    # Per-bit all-ones arithmetic mask (shift-left then arithmetic shift-right)
    # instead of compare+select; accumulator initialized from the j=0 term.
    # Pure VPU bitwise work, no scan over seq_len, no cross-lane traffic.
    mask = (gray << 31) >> 31                     # bit 0 -> 0 / -1 (all ones)
    acc = dirs_ref[pl.ds(0, 1), :] & mask         # (1, dim_tile) broadcast in &
    for j in range(1, bitwidth):                  # bitwidth is tiny and static
        mask = (gray << (31 - j)) >> 31
        acc = acc ^ (dirs_ref[pl.ds(j, 1), :] & mask)

    out_ref[...] = acc.astype(out_ref.dtype)      # single cast at the store


# ----------------------------------------------------------------------------
# Host reference (same construction) — used for small configs and for testing.
# ----------------------------------------------------------------------------
def _sobol_table_reference(bitwidth, dim):
    D = _direction_numbers(dim, bitwidth)
    seq_len = 1 << bitwidth
    i = np.arange(seq_len)
    g = i ^ (i >> 1)
    out = np.zeros((seq_len, dim), np.int32)
    for j in range(bitwidth):
        sel = ((g >> j) & 1).astype(bool)
        out[sel] ^= D[j]
    return out


# ----------------------------------------------------------------------------
# Cached padded-table builder. Returns (seq_len, 128) table whose first
# _MAX_DIM columns are the Sobol integers, remaining columns zero.
# ----------------------------------------------------------------------------
@functools.lru_cache(maxsize=None)
def _sobol_table_padded(bitwidth, dtype_name, use_pallas=None, row_tile=None):
    if not (1 <= bitwidth <= _MAX_BITWIDTH):
        raise ValueError(f"bitwidth={bitwidth} not in [1, {_MAX_BITWIDTH}] "
                         "(int32 construction requires bitwidth <= 24).")
    rtype = jnp.dtype(dtype_name)
    seq_len = 1 << bitwidth
    dim_pad = _round_up(_MAX_DIM, _LANE)          # 128

    if use_pallas is None:
        # Small tables: pallas_call launch + per-step overhead dominates; a
        # host build + one H2D copy is strictly faster end-to-end.
        use_pallas = seq_len >= _PALLAS_MIN_SEQ_LEN

    if not use_pallas:
        host = np.zeros((seq_len, dim_pad), np.int32)
        host[:, :_MAX_DIM] = _sobol_table_reference(bitwidth, _MAX_DIM)
        return jax.device_put(host.astype(rtype))

    # Lane-dense direction numbers, zero-padded columns produce zero output.
    dirs = np.zeros((bitwidth, dim_pad), np.int32)
    dirs[:, :_MAX_DIM] = _direction_numbers(_MAX_DIM, bitwidth)

    if row_tile is None:
        row_tile = min(seq_len, 4096)             # <= 2 MiB/buffer: fits v7x VMEM
    row_tile = min(row_tile, seq_len)
    assert seq_len % row_tile == 0 and (row_tile == seq_len or row_tile % 8 == 0), (
        f"row_tile={row_tile} must divide seq_len={seq_len} and be a multiple of 8")

    grid = (dim_pad // _LANE, seq_len // row_tile)  # (dim tiles, row tiles)
    table = pl.pallas_call(
        _sobol_table_kernel,
        out_shape=jax.ShapeDtypeStruct((seq_len, dim_pad), rtype),
        grid_spec=pltpu.PrefetchScalarGridSpec(
            num_scalar_prefetch=0,
            grid=grid,
            # dirs tile stays resident across the row axis (index ignores r).
            in_specs=[pl.BlockSpec((bitwidth, _LANE), lambda d, r: (0, d))],
            out_specs=pl.BlockSpec((row_tile, _LANE), lambda d, r: (r, d)),
        ),
        compiler_params=pltpu.CompilerParams(
            # Both axes independent: v7x megacore shards row tiles over 2 TCs;
            # measured-neutral on single-TC v5e/v6e.
            dimension_semantics=("parallel", "parallel")),
    )(jnp.asarray(dirs))
    return table


# ----------------------------------------------------------------------------
# Module wrapper (forward() returns the cached constant table, like PyTorch)
# ----------------------------------------------------------------------------
class RNGMulti:
    """JAX/Pallas port of UnarySim RNGMulti (Sobol mode)."""

    def __init__(self, bitwidth=8, dim=1, rng="Sobol", transpose=False,
                 rtype=jnp.float32, use_pallas=None, row_tile=None):
        if rng != "Sobol":
            # TODO(synk): 'LFSR' (sequential LFSR state machine) and 'SYS'
            # (torch.randperm) have no clean data-parallel Pallas equivalent.
            raise NotImplementedError("Only rng='Sobol' is implemented.")
        if dim > _MAX_DIM:
            raise ValueError(f"dim={dim} > {_MAX_DIM}: extend _JOE_KUO_NEW6.")
        self.bitwidth = bitwidth
        self.dim = dim
        self.seq_len = 1 << bitwidth
        # Note: matching torch's .type() semantics, casting to narrow dtypes
        # wraps/loses exactness (int8 wraps for bitwidth >= 8, fp16 overflows
        # for bitwidth >= 17, bf16 inexact above ~2**8).
        padded = _sobol_table_padded(bitwidth, jnp.dtype(rtype).name,
                                     use_pallas, row_tile)
        table = padded[:, :dim]          # one-time slice; padded table stays cached
        if transpose:
            table = table.T
        self.rng_seq = table

    def __call__(self):
        return self.rng_seq

    forward = __call__


if __name__ == "__main__":
    _key = jax.random.PRNGKey(0)  # module takes no tensor inputs; table is deterministic

    # 1) Small config, forcing the Pallas path to exercise the kernel.
    bw, dim = 8, 8                # seq_len = 256
    module = RNGMulti(bitwidth=bw, dim=dim, rng="Sobol", transpose=False,
                      rtype=jnp.float32, use_pallas=True)
    out = jax.block_until_ready(module())
    assert out.shape == (1 << bw, dim), out.shape
    assert out.dtype == jnp.float32, out.dtype
    ref = _sobol_table_reference(bw, dim).astype(np.float32)
    np.testing.assert_array_equal(np.asarray(out), ref)
    # Known 1-D Sobol sequence scaled by 256: 0, .5, .75, .25, .375, .875, .625, .125
    expected_dim0 = np.array([0, 128, 192, 64, 96, 224, 160, 32], np.float32)
    np.testing.assert_array_equal(np.asarray(out[:8, 0]), expected_dim0)

    # 2) Exercise the row-tiled 2-D grid (multiple seq_len tiles) cheaply.
    t = jax.block_until_ready(
        _sobol_table_padded(11, "float32", use_pallas=True, row_tile=512))
    ref11 = _sobol_table_reference(11, _MAX_DIM).astype(np.float32)
    np.testing.assert_array_equal(np.asarray(t[:, :_MAX_DIM]), ref11)
    np.testing.assert_array_equal(np.asarray(t[:, _MAX_DIM:]), 0.0)

    # 3) Auto dispatch (host path for small configs) matches; transpose works.
    module_auto = RNGMulti(bitwidth=bw, dim=dim, rng="Sobol", rtype=jnp.float32)
    np.testing.assert_array_equal(np.asarray(module_auto()), np.asarray(out))
    module_t = RNGMulti(bitwidth=6, dim=3, rng="Sobol", transpose=True,
                        rtype=jnp.float32)
    assert module_t().shape == (3, 64), module_t().shape

    print("KERNEL_OK")
</pallas_src>

<mosaic_0001>
module attributes {stable_mosaic.version = 11 : i64} {
  func.func @_sobol_table_kernel(%arg0: i32, %arg1: i32, %arg2: memref<8x128xi32, #tpu.memory_space<vmem>>, %arg3: memref<256x128xf32, #tpu.memory_space<vmem>>) attributes {dimension_semantics = [#tpu.dimension_semantics<parallel>, #tpu.dimension_semantics<parallel>], iteration_bounds = array<i64: 1, 1>, scalar_prefetch = 0 : i64, scratch_operands = 0 : i64, tpu.core_type = #tpu.core_type<tc>, window_params = [{transform_indices = @transform_0, window_bounds = array<i64: 8, 128>}, {transform_indices = @transform_1, window_bounds = array<i64: 256, 128>}]} {
    %c256_i32 = arith.constant 256 : i32
    %0 = arith.muli %arg1, %c256_i32 : i32
    %1 = tpu.iota {dimensions = array<i32: 0>} : vector<256x128xi32>
    %2 = vector.broadcast %0 : i32 to vector<256x128xi32>
    %3 = arith.addi %2, %1 : vector<256x128xi32>
    %c1_i32 = arith.constant 1 : i32
    %4 = vector.broadcast %c1_i32 : i32 to vector<256x128xi32>
    %5 = arith.shrsi %3, %4 : vector<256x128xi32>
    %6 = arith.xori %3, %5 : vector<256x128xi32>
    %c31_i32 = arith.constant 31 : i32
    %7 = vector.broadcast %c31_i32 : i32 to vector<256x128xi32>
    %8 = arith.shli %6, %7 : vector<256x128xi32>
    %c31_i32_0 = arith.constant 31 : i32
    %9 = vector.broadcast %c31_i32_0 : i32 to vector<256x128xi32>
    %10 = arith.shrsi %8, %9 : vector<256x128xi32>
    %c0 = arith.constant 0 : index
    %c0_1 = arith.constant 0 : index
    %11 = vector.load %arg2[%c0, %c0_1] : memref<8x128xi32, #tpu.memory_space<vmem>>, vector<1x128xi32>
    %12 = vector.broadcast %11 : vector<1x128xi32> to vector<256x128xi32>
    %13 = arith.andi %12, %10 : vector<256x128xi32>
    %c30_i32 = arith.constant 30 : i32
    %14 = vector.broadcast %c30_i32 : i32 to vector<256x128xi32>
    %15 = arith.shli %6, %14 : vector<256x128xi32>
    %c31_i32_2 = arith.constant 31 : i32
    %16 = vector.broadcast %c31_i32_2 : i32 to vector<256x128xi32>
    %17 = arith.shrsi %15, %16 : vector<256x128xi32>
    %c1 = arith.constant 1 : index
    %c0_3 = arith.constant 0 : index
    %18 = vector.load %arg2[%c1, %c0_3] : memref<8x128xi32, #tpu.memory_space<vmem>>, vector<1x128xi32>
    %19 = vector.broadcast %18 : vector<1x128xi32> to vector<256x128xi32>
    %20 = arith.andi %19, %17 : vector<256x128xi32>
    %21 = arith.xori %13, %20 : vector<256x128xi32>
    %c29_i32 = arith.constant 29 : i32
    %22 = vector.broadcast %c29_i32 : i32 to vector<256x128xi32>
    %23 = arith.shli %6, %22 : vector<256x128xi32>
    %c31_i32_4 = arith.constant 31 : i32
    %24 = vector.broadcast %c31_i32_4 : i32 to vector<256x128xi32>
    %25 = arith.shrsi %23, %24 : vector<256x128xi32>
    %c2 = arith.constant 2 : index
    %c0_5 = arith.constant 0 : index
    %26 = vector.load %arg2[%c2, %c0_5] : memref<8x128xi32, #tpu.memory_space<vmem>>, vector<1x128xi32>
    %27 = vector.broadcast %26 : vector<1x128xi32> to vector<256x128xi32>
    %28 = arith.andi %27, %25 : vector<256x128xi32>
    %29 = arith.xori %21, %28 : vector<256x128xi32>
    %c28_i32 = arith.constant 28 : i32
    %30 = vector.broadcast %c28_i32 : i32 to vector<256x128xi32>
    %31 = arith.shli %6, %30 : vector<256x128xi32>
    %c31_i32_6 = arith.constant 31 : i32
    %32 = vector.broadcast %c31_i32_6 : i32 to vector<256x128xi32>
    %33 = arith.shrsi %31, %32 : vector<256x128xi32>
    %c3 = arith.constant 3 : index
    %c0_7 = arith.constant 0 : index
    %34 = vector.load %arg2[%c3, %c0_7] : memref<8x128xi32, #tpu.memory_space<vmem>>, vector<1x128xi32>
    %35 = vector.broadcast %34 : vector<1x128xi32> to vector<256x128xi32>
    %36 = arith.andi %35, %33 : vector<256x128xi32>
    %37 = arith.xori %29, %36 : vector<256x128xi32>
    %c27_i32 = arith.constant 27 : i32
    %38 = vector.broadcast %c27_i32 : i32 to vector<256x128xi32>
    %39 = arith.shli %6, %38 : vector<256x128xi32>
    %c31_i32_8 = arith.constant 31 : i32
    %40 = vector.broadcast %c31_i32_8 : i32 to vector<256x128xi32>
    %41 = arith.shrsi %39, %40 : vector<256x128xi32>
    %c4 = arith.constant 4 : index
    %c0_9 = arith.constant 0 : index
    %42 = vector.load %arg2[%c4, %c0_9] : memref<8x128xi32, #tpu.memory_space<vmem>>, vector<1x128xi32>
    %43 = vector.broadcast %42 : vector<1x128xi32> to vector<256x128xi32>
    %44 = arith.andi %43, %41 : vector<256x128xi32>
    %45 = arith.xori %37, %44 : vector<256x128xi32>
    %c26_i32 = arith.constant 26 : i32
    %46 = vector.broadcast %c26_i32 : i32 to vector<256x128xi32>
    %47 = arith.shli %6, %46 : vector<256x128xi32>
    %c31_i32_10 = arith.constant 31 : i32
    %48 = vector.broadcast %c31_i32_10 : i32 to vector<256x128xi32>
    %49 = arith.shrsi %47, %48 : vector<256x128xi32>
    %c5 = arith.constant 5 : index
    %c0_11 = arith.constant 0 : index
    %50 = vector.load %arg2[%c5, %c0_11] : memref<8x128xi32, #tpu.memory_space<vmem>>, vector<1x128xi32>
    %51 = vector.broadcast %50 : vector<1x128xi32> to vector<256x128xi32>
    %52 = arith.andi %51, %49 : vector<256x128xi32>
    %53 = arith.xori %45, %52 : vector<256x128xi32>
    %c25_i32 = arith.constant 25 : i32
    %54 = vector.broadcast %c25_i32 : i32 to vector<256x128xi32>
    %55 = arith.shli %6, %54 : vector<256x128xi32>
    %c31_i32_12 = arith.constant 31 : i32
    %56 = vector.broadcast %c31_i32_12 : i32 to vector<256x128xi32>
    %57 = arith.shrsi %55, %56 : vector<256x128xi32>
    %c6 = arith.constant 6 : index
    %c0_13 = arith.constant 0 : index
    %58 = vector.load %arg2[%c6, %c0_13] : memref<8x128xi32, #tpu.memory_space<vmem>>, vector<1x128xi32>
    %59 = vector.broadcast %58 : vector<1x128xi32> to vector<256x128xi32>
    %60 = arith.andi %59, %57 : vector<256x128xi32>
    %61 = arith.xori %53, %60 : vector<256x128xi32>
    %c24_i32 = arith.constant 24 : i32
    %62 = vector.broadcast %c24_i32 : i32 to vector<256x128xi32>
    %63 = arith.shli %6, %62 : vector<256x128xi32>
    %c31_i32_14 = arith.constant 31 : i32
    %64 = vector.broadcast %c31_i32_14 : i32 to vector<256x128xi32>
    %65 = arith.shrsi %63, %64 : vector<256x128xi32>
    %c7 = arith.constant 7 : index
    %c0_15 = arith.constant 0 : index
    %66 = vector.load %arg2[%c7, %c0_15] : memref<8x128xi32, #tpu.memory_space<vmem>>, vector<1x128xi32>
    %67 = vector.broadcast %66 : vector<1x128xi32> to vector<256x128xi32>
    %68 = arith.andi %67, %65 : vector<256x128xi32>
    %69 = arith.xori %61, %68 : vector<256x128xi32>
    %70 = arith.sitofp %69 : vector<256x128xi32> to vector<256x128xf32>
    %c0_16 = arith.constant 0 : index
    %c0_17 = arith.constant 0 : index
    %71 = vector.load %arg3[%c0_16, %c0_17] : memref<256x128xf32, #tpu.memory_space<vmem>>, vector<256x128xf32>
    tpu.vector_store %arg3[%c0_16, %c0_17], %70 {strides = array<i32>} : memref<256x128xf32, #tpu.memory_space<vmem>>, vector<256x128xf32>,
    return
  }
  func.func @transform_0(%arg0: i32, %arg1: i32) -> (i32, i32) {
    %c0_i32 = arith.constant 0 : i32
    %c0_i32_0 = arith.constant 0 : i32
    return %c0_i32, %arg0 : i32, i32
  }
  func.func @transform_1(%arg0: i32, %arg1: i32) -> (i32, i32) {
    %c0_i32 = arith.constant 0 : i32
    return %arg1, %arg0 : i32, i32
  }
}

</mosaic_0001>

<llo_original>
// kernel: tpu_custom_call.1
$region0: #{tpu_custom_call.1}
  #allocation0 [shape = 'u32[]', space=smem, size = 0x4, offset = 0x4, fixed_abs, tag = 'smem constant byte address 0x4 - core index']
  #allocation1 [shape = 'u32[144,128]{1,0:T(1,128)}', space=vmem, size = 0x12000, scoped, tag = 'internal scratch']
  %s0 = inlined_call_operand.hbm [shape: s32[8,128], index: 0, kind: input, shape index: {}]
  %s1 = inlined_call_operand.hbm [shape: f32[256,128], index: 1, kind: output, shape index: {}]
  %s2 = sld [smem:[#allocation0]]
  $region18: #{tpu_custom_call.1} parent=0
    _
  %s4 = ssub.s32 1, %s2
  %s5 = scalar_select 0, %s4, %s2
  $region1: #{tpu_custom_call.1} parent=0
    #allocation2 [shape = 'u8[4096]{0}', space=vmem, size = 0x1000, scoped, tag = 'input window, operand 0, single buffered']
    #allocation3 [shape = 's32[1]{0}', space=sflag, size = 0x4, scoped, tag = 'scoped memory for tpu_custom_call.1']
    #allocation4 [shape = 's32[1]{0}', space=sflag, size = 0x4, scoped, tag = 'scoped memory for tpu_custom_call.1']
    #allocation5 [shape = 'u8[131072]{0}', space=vmem, size = 0x20000, scoped, tag = 'output window, operand 0, single buffered']
    %6 = vsyncpa [#allocation3], 0
    %7 = vsyncpa [#allocation4], 0
    // Predicated region
    $region2: #{tpu_custom_call.1} parent=1 // pred_check
      _
    $region3: #{tpu_custom_call.1} parent=1 // pred_check_branch
      %9 = sbr.rel (0) target = $region5
    $region4: #{tpu_custom_call.1} parent=1 // pred_region
      %s11 = ssub.s32 128, 128
      %12 = vsyncadd [#allocation3], %s11
      %s14 = sshll.u32 [#allocation2], 4
      %s15 = int_to_ptr.vmem [resolvable:$true] %s14
      %17 = dma.hbm_to_vmem [thread:$0]  %s0, 128, %s15, [#allocation3]
    $region5: #{tpu_custom_call.1} parent=1 // pred_fallthru
      _
    // Predicated region
    $region6: #{tpu_custom_call.1} parent=1 // pred_check
      _
    $region7: #{tpu_custom_call.1} parent=1 // pred_check_branch
      %19 = sbr.rel (0) target = $region9
    $region8: #{tpu_custom_call.1} parent=1 // pred_region
      %20 = dma.done [#allocation3], 128
    $region9: #{tpu_custom_call.1} parent=1 // pred_fallthru
      _
    %s21 = smul.u32 0, 256
    %v22 = vlaneseq
    %v23 = vshrl.u32 %v22, 7
    %v24 = vadd.s32 %v23, 8
    %v25 = vadd.s32 %v23, 16
    %v26 = vadd.s32 %v23, 24
    %v27 = vadd.s32 %v23, 32
    %v28 = vadd.s32 %v23, 40
    %v29 = vadd.s32 %v23, 48
    %v30 = vadd.s32 %v23, 56
    %v31 = vadd.s32 %v23, 64
    %v32 = vadd.s32 %v23, 72
    %v33 = vadd.s32 %v23, 80
    %v34 = vadd.s32 %v23, 88
    %v35 = vadd.s32 %v23, 96
    %v36 = vadd.s32 %v23, 104
    %v37 = vadd.s32 %v23, 112
    %v38 = vadd.s32 %v23, 120
    %v39 = vadd.s32 %v23, 128
    %v40 = vadd.s32 %v23, 136
    %v41 = vadd.s32 %v23, 144
    %v42 = vadd.s32 %v23, 152
    %v43 = vadd.s32 %v23, 160
    %v44 = vadd.s32 %v23, 168
    %v45 = vadd.s32 %v23, 176
    %v46 = vadd.s32 %v23, 184
    %v47 = vadd.s32 %v23, 192
    %v48 = vadd.s32 %v23, 200
    %v49 = vadd.s32 %v23, 208
    %v50 = vadd.s32 %v23, 216
    %v51 = vadd.s32 %v23, 224
    %v52 = vadd.s32 %v23, 232
    %v53 = vadd.s32 %v23, 240
    %v54 = vadd.s32 %v23, 248
    %v55 = vstv %s21
    %v56 = vadd.s32 %v55, %v23
    %v57 = vadd.s32 %v55, %v24
    %v58 = vadd.s32 %v55, %v25
    %v59 = vadd.s32 %v55, %v26
    %v60 = vadd.s32 %v55, %v27
    %v61 = vadd.s32 %v55, %v28
    %v62 = vadd.s32 %v55, %v29
    %v63 = vadd.s32 %v55, %v30
    %v64 = vadd.s32 %v55, %v31
    %v65 = vadd.s32 %v55, %v32
    %v66 = vadd.s32 %v55, %v33
    %v67 = vadd.s32 %v55, %v34
    %v68 = vadd.s32 %v55, %v35
    %v69 = vadd.s32 %v55, %v36
    %v70 = vadd.s32 %v55, %v37
    %v71 = vadd.s32 %v55, %v38
    %v72 = vadd.s32 %v55, %v39
    %v73 = vadd.s32 %v55, %v40
    %v74 = vadd.s32 %v55, %v41
    %v75 = vadd.s32 %v55, %v42
    %v76 = vadd.s32 %v55, %v43
    %v77 = vadd.s32 %v55, %v44
    %v78 = vadd.s32 %v55, %v45
    %v79 = vadd.s32 %v55, %v46
    %v80 = vadd.s32 %v55, %v47
    %v81 = vadd.s32 %v55, %v48
    %v82 = vadd.s32 %v55, %v49
    %v83 = vadd.s32 %v55, %v50
    %v84 = vadd.s32 %v55, %v51
    %v85 = vadd.s32 %v55, %v52
    %v86 = vadd.s32 %v55, %v53
    %v87 = vadd.s32 %v55, %v54
    %v88 = vshra.s32 %v56, 1
    %v89 = vshra.s32 %v57, 1
    %v90 = vshra.s32 %v58, 1
    %v91 = vshra.s32 %v59, 1
    %v92 = vshra.s32 %v60, 1
    %v93 = vshra.s32 %v61, 1
    %v94 = vshra.s32 %v62, 1
    %v95 = vshra.s32 %v63, 1
    %v96 = vshra.s32 %v64, 1
    %v97 = vshra.s32 %v65, 1
    %v98 = vshra.s32 %v66, 1
    %v99 = vshra.s32 %v67, 1
    %v100 = vshra.s32 %v68, 1
    %v101 = vshra.s32 %v69, 1
    %v102 = vshra.s32 %v70, 1
    %v103 = vshra.s32 %v71, 1
    %v104 = vshra.s32 %v72, 1
    %v105 = vshra.s32 %v73, 1
    %v106 = vshra.s32 %v74, 1
    %v107 = vshra.s32 %v75, 1
    %v108 = vshra.s32 %v76, 1
    %v109 = vshra.s32 %v77, 1
    %v110 = vshra.s32 %v78, 1
    %v111 = vshra.s32 %v79, 1
    %v112 = vshra.s32 %v80, 1
    %v113 = vshra.s32 %v81, 1
    %v114 = vshra.s32 %v82, 1
    %v115 = vshra.s32 %v83, 1
    %v116 = vshra.s32 %v84, 1
    %v117 = vshra.s32 %v85, 1
    %v118 = vshra.s32 %v86, 1
    %v119 = vshra.s32 %v87, 1
    %v120 = vxor.u32 %v56, %v88
    %v121 = vxor.u32 %v57, %v89
    %v122 = vxor.u32 %v58, %v90
    %v123 = vxor.u32 %v59, %v91
    %v124 = vxor.u32 %v60, %v92
    %v125 = vxor.u32 %v61, %v93
    %v126 = vxor.u32 %v62, %v94
    %v127 = vxor.u32 %v63, %v95
    %v128 = vxor.u32 %v64, %v96
    %v129 = vxor.u32 %v65, %v97
    %v130 = vxor.u32 %v66, %v98
    %v131 = vxor.u32 %v67, %v99
    %v132 = vxor.u32 %v68, %v100
    %v133 = vxor.u32 %v69, %v101
    %v134 = vxor.u32 %v70, %v102
    %v135 = vxor.u32 %v71, %v103
    %v136 = vxor.u32 %v72, %v104
    %v137 = vxor.u32 %v73, %v105
    %v138 = vxor.u32 %v74, %v106
    %v139 = vxor.u32 %v75, %v107
    %v140 = vxor.u32 %v76, %v108
    %v141 = vxor.u32 %v77, %v109
    %v142 = vxor.u32 %v78, %v110
    %v143 = vxor.u32 %v79, %v111
    %v144 = vxor.u32 %v80, %v112
    %v145 = vxor.u32 %v81, %v113
    %v146 = vxor.u32 %v82, %v114
    %v147 = vxor.u32 %v83, %v115
    %v148 = vxor.u32 %v84, %v116
    %v149 = vxor.u32 %v85, %v117
    %v150 = vxor.u32 %v86, %v118
    %v151 = vxor.u32 %v87, %v119
    %v152 = vshll.u32 %v120, 31
    %v153 = vshll.u32 %v121, 31
    %v154 = vshll.u32 %v122, 31
    %v155 = vshll.u32 %v123, 31
    %v156 = vshll.u32 %v124, 31
    %v157 = vshll.u32 %v125, 31
    %v158 = vshll.u32 %v126, 31
    %v159 = vshll.u32 %v127, 31
    %v160 = vshll.u32 %v128, 31
    %v161 = vshll.u32 %v129, 31
    %v162 = vshll.u32 %v130, 31
    %v163 = vshll.u32 %v131, 31
    %v164 = vshll.u32 %v132, 31
    %v165 = vshll.u32 %v133, 31
    %v166 = vshll.u32 %v134, 31
    %v167 = vshll.u32 %v135, 31
    %v168 = vshll.u32 %v136, 31
    %v169 = vshll.u32 %v137, 31
    %v170 = vshll.u32 %v138, 31
    %v171 = vshll.u32 %v139, 31
    %v172 = vshll.u32 %v140, 31
    %v173 = vshll.u32 %v141, 31
    %v174 = vshll.u32 %v142, 31
    %v175 = vshll.u32 %v143, 31
    %v176 = vshll.u32 %v144, 31
    %v177 = vshll.u32 %v145, 31
    %v178 = vshll.u32 %v146, 31
    %v179 = vshll.u32 %v147, 31
    %v180 = vshll.u32 %v148, 31
    %v181 = vshll.u32 %v149, 31
    %v182 = vshll.u32 %v150, 31
    %v183 = vshll.u32 %v151, 31
    %v184 = vshra.s32 %v152, 31
    %v185 = vshra.s32 %v153, 31
    %v186 = vshra.s32 %v154, 31
    %v187 = vshra.s32 %v155, 31
    %v188 = vshra.s32 %v156, 31
    %v189 = vshra.s32 %v157, 31
    %v190 = vshra.s32 %v158, 31
    %v191 = vshra.s32 %v159, 31
    %v192 = vshra.s32 %v160, 31
    %v193 = vshra.s32 %v161, 31
    %v194 = vshra.s32 %v162, 31
    %v195 = vshra.s32 %v163, 31
    %v196 = vshra.s32 %v164, 31
    %v197 = vshra.s32 %v165, 31
    %v198 = vshra.s32 %v166, 31
    %v199 = vshra.s32 %v167, 31
    %v200 = vshra.s32 %v168, 31
    %v201 = vshra.s32 %v169, 31
    %v202 = vshra.s32 %v170, 31
    %v203 = vshra.s32 %v171, 31
    %v204 = vshra.s32 %v172, 31
    %v205 = vshra.s32 %v173, 31
    %v206 = vshra.s32 %v174, 31
    %v207 = vshra.s32 %v175, 31
    %v208 = vshra.s32 %v176, 31
    %v209 = vshra.s32 %v177, 31
    %v210 = vshra.s32 %v178, 31
    %v211 = vshra.s32 %v179, 31
    %v212 = vshra.s32 %v180, 31
    %v213 = vshra.s32 %v181, 31
    %v214 = vshra.s32 %v182, 31
    %v215 = vshra.s32 %v183, 31
    %v216 = vld [vmem:[#allocation2] sm:$0x1]
    %v217 = vlaneseq
    %v218 = vshrl.u32 %v217, 7
    %v219 = vsub.s32 0, %v218
    %v220 = vrot.slane %v216, %v219
    %v221 = vand.u32 %v220, %v184
    %v222 = vand.u32 %v220, %v185
    %v223 = vand.u32 %v220, %v186
    %v224 = vand.u32 %v220, %v187
    %v225 = vand.u32 %v220, %v188
    %v226 = vand.u32 %v220, %v189
    %v227 = vand.u32 %v220, %v190
    %v228 = vand.u32 %v220, %v191
    %v229 = vand.u32 %v220, %v192
    %v230 = vand.u32 %v220, %v193
    %v231 = vand.u32 %v220, %v194
    %v232 = vand.u32 %v220, %v195
    %v233 = vand.u32 %v220, %v196
    %v234 = vand.u32 %v220, %v197
    %v235 = vand.u32 %v220, %v198
    %v236 = vand.u32 %v220, %v199
    %v237 = vand.u32 %v220, %v200
    %v238 = vand.u32 %v220, %v201
    %v239 = vand.u32 %v220, %v202
    %v240 = vand.u32 %v220, %v203
    %v241 = vand.u32 %v220, %v204
    %v242 = vand.u32 %v220, %v205
    %v243 = vand.u32 %v220, %v206
    %v244 = vand.u32 %v220, %v207
    %v245 = vand.u32 %v220, %v208
    %v246 = vand.u32 %v220, %v209
    %v247 = vand.u32 %v220, %v210
    %v248 = vand.u32 %v220, %v211
    %v249 = vand.u32 %v220, %v212
    %v250 = vand.u32 %v220, %v213
    %v251 = vand.u32 %v220, %v214
    %v252 = vand.u32 %v220, %v215
    %v253 = vshll.u32 %v120, 30
    %v254 = vshll.u32 %v121, 30
    %v255 = vshll.u32 %v122, 30
    %v256 = vshll.u32 %v123, 30
    %v257 = vshll.u32 %v124, 30
    %v258 = vshll.u32 %v125, 30
    %v259 = vshll.u32 %v126, 30
    %v260 = vshll.u32 %v127, 30
    %v261 = vshll.u32 %v128, 30
    %v262 = vshll.u32 %v129, 30
    %v263 = vshll.u32 %v130, 30
    %v264 = vshll.u32 %v131, 30
    %v265 = vshll.u32 %v132, 30
    %v266 = vshll.u32 %v133, 30
    %v267 = vshll.u32 %v134, 30
    %v268 = vshll.u32 %v135, 30
    %v269 = vshll.u32 %v136, 30
    %v270 = vshll.u32 %v137, 30
    %v271 = vshll.u32 %v138, 30
    %v272 = vshll.u32 %v139, 30
    %v273 = vshll.u32 %v140, 30
    %v274 = vshll.u32 %v141, 30
    %v275 = vshll.u32 %v142, 30
    %v276 = vshll.u32 %v143, 30
    %v277 = vshll.u32 %v144, 30
    %v278 = vshll.u32 %v145, 30
    %v279 = vshll.u32 %v146, 30
    %v280 = vshll.u32 %v147, 30
    %v281 = vshll.u32 %v148, 30
    %v282 = vshll.u32 %v149, 30
    %v283 = vshll.u32 %v150, 30
    %v284 = vshll.u32 %v151, 30
    %v285 = vshra.s32 %v253, 31
    %v286 = vshra.s32 %v254, 31
    %v287 = vshra.s32 %v255, 31
    %v288 = vshra.s32 %v256, 31
    %v289 = vshra.s32 %v257, 31
    %v290 = vshra.s32 %v258, 31
    %v291 = vshra.s32 %v259, 31
    %v292 = vshra.s32 %v260, 31
    %v293 = vshra.s32 %v261, 31
    %v294 = vshra.s32 %v262, 31
    %v295 = vshra.s32 %v263, 31
    %v296 = vshra.s32 %v264, 31
    %v297 = vshra.s32 %v265, 31
    %v298 = vshra.s32 %v266, 31
    %v299 = vshra.s32 %v267, 31
    %v300 = vshra.s32 %v268, 31
    %v301 = vshra.s32 %v269, 31
    %v302 = vshra.s32 %v270, 31
    %v303 = vshra.s32 %v271, 31
    %v304 = vshra.s32 %v272, 31
    %v305 = vshra.s32 %v273, 31
    %v306 = vshra.s32 %v274, 31
    %v307 = vshra.s32 %v275, 31
    %v308 = vshra.s32 %v276, 31
    %v309 = vshra.s32 %v277, 31
    %v310 = vshra.s32 %v278, 31
    %v311 = vshra.s32 %v279, 31
    %v312 = vshra.s32 %v280, 31
    %v313 = vshra.s32 %v281, 31
    %v314 = vshra.s32 %v282, 31
    %v315 = vshra.s32 %v283, 31
    %v316 = vshra.s32 %v284, 31
    %v317 = vld [vmem:[#allocation2 + $0x1] sm:$0x1]
    %v318 = vlaneseq
    %v319 = vshrl.u32 %v318, 7
    %v320 = vsub.s32 0, %v319
    %v321 = vrot.slane %v317, %v320
    %v322 = vand.u32 %v321, %v285
    %v323 = vand.u32 %v321, %v286
    %v324 = vand.u32 %v321, %v287
    %v325 = vand.u32 %v321, %v288
    %v326 = vand.u32 %v321, %v289
    %v327 = vand.u32 %v321, %v290
    %v328 = vand.u32 %v321, %v291
    %v329 = vand.u32 %v321, %v292
    %v330 = vand.u32 %v321, %v293
    %v331 = vand.u32 %v321, %v294
    %v332 = vand.u32 %v321, %v295
    %v333 = vand.u32 %v321, %v296
    %v334 = vand.u32 %v321, %v297
    %v335 = vand.u32 %v321, %v298
    %v336 = vand.u32 %v321, %v299
    %v337 = vand.u32 %v321, %v300
    %v338 = vand.u32 %v321, %v301
    %v339 = vand.u32 %v321, %v302
    %v340 = vand.u32 %v321, %v303
    %v341 = vand.u32 %v321, %v304
    %v342 = vand.u32 %v321, %v305
    %v343 = vand.u32 %v321, %v306
    %v344 = vand.u32 %v321, %v307
    %v345 = vand.u32 %v321, %v308
    %v346 = vand.u32 %v321, %v309
    %v347 = vand.u32 %v321, %v310
    %v348 = vand.u32 %v321, %v311
    %v349 = vand.u32 %v321, %v312
    %v350 = vand.u32 %v321, %v313
    %v351 = vand.u32 %v321, %v314
    %v352 = vand.u32 %v321, %v315
    %v353 = vand.u32 %v321, %v316
    %v354 = vxor.u32 %v221, %v322
    %v355 = vxor.u32 %v222, %v323
    %v356 = vxor.u32 %v223, %v324
    %v357 = vxor.u32 %v224, %v325
    %v358 = vxor.u32 %v225, %v326
    %v359 = vxor.u32 %v226, %v327
    %v360 = vxor.u32 %v227, %v328
    %v361 = vxor.u32 %v228, %v329
    %v362 = vxor.u32 %v229, %v330
    %v363 = vxor.u32 %v230, %v331
    %v364 = vxor.u32 %v231, %v332
    %v365 = vxor.u32 %v232, %v333
    %v366 = vxor.u32 %v233, %v334
    %v367 = vxor.u32 %v234, %v335
    %v368 = vxor.u32 %v235, %v336
    %v369 = vxor.u32 %v236, %v337
    %v370 = vxor.u32 %v237, %v338
    %v371 = vxor.u32 %v238, %v339
    %v372 = vxor.u32 %v239, %v340
    %v373 = vxor.u32 %v240, %v341
    %v374 = vxor.u32 %v241, %v342
    %v375 = vxor.u32 %v242, %v343
    %v376 = vxor.u32 %v243, %v344
    %v377 = vxor.u32 %v244, %v345
    %v378 = vxor.u32 %v245, %v346
    %v379 = vxor.u32 %v246, %v347
    %v380 = vxor.u32 %v247, %v348
    %v381 = vxor.u32 %v248, %v349
    %v382 = vxor.u32 %v249, %v350
    %v383 = vxor.u32 %v250, %v351
    %v384 = vxor.u32 %v251, %v352
    %v385 = vxor.u32 %v252, %v353
    %v386 = vshll.u32 %v120, 29
    %v387 = vshll.u32 %v121, 29
    %v388 = vshll.u32 %v122, 29
    %v389 = vshll.u32 %v123, 29
    %v390 = vshll.u32 %v124, 29
    %v391 = vshll.u32 %v125, 29
    %v392 = vshll.u32 %v126, 29
    %v393 = vshll.u32 %v127, 29
    %v394 = vshll.u32 %v128, 29
    %v395 = vshll.u32 %v129, 29
    %v396 = vshll.u32 %v130, 29
    %v397 = vshll.u32 %v131, 29
    %v398 = vshll.u32 %v132, 29
    %v399 = vshll.u32 %v133, 29
    %v400 = vshll.u32 %v134, 29
    %v401 = vshll.u32 %v135, 29
    %v402 = vshll.u32 %v136, 29
    %v403 = vshll.u32 %v137, 29
    %v404 = vshll.u32 %v138, 29
    %v405 = vshll.u32 %v139, 29
    %v406 = vshll.u32 %v140, 29
    %v407 = vshll.u32 %v141, 29
    %v408 = vshll.u32 %v142, 29
    %v409 = vshll.u32 %v143, 29
    %v410 = vshll.u32 %v144, 29
    %v411 = vshll.u32 %v145, 29
    %v412 = vshll.u32 %v146, 29
    %v413 = vshll.u32 %v147, 29
    %v414 = vshll.u32 %v148, 29
    %v415 = vshll.u32 %v149, 29
    %v416 = vshll.u32 %v150, 29
    %v417 = vshll.u32 %v151, 29
    %v418 = vshra.s32 %v386, 31
    %v419 = vshra.s32 %v387, 31
    %v420 = vshra.s32 %v388, 31
    %v421 = vshra.s32 %v389, 31
    %v422 = vshra.s32 %v390, 31
    %v423 = vshra.s32 %v391, 31
    %v424 = vshra.s32 %v392, 31
    %v425 = vshra.s32 %v393, 31
    %v426 = vshra.s32 %v394, 31
    %v427 = vshra.s32 %v395, 31
    %v428 = vshra.s32 %v396, 31
    %v429 = vshra.s32 %v397, 31
    %v430 = vshra.s32 %v398, 31
    %v431 = vshra.s32 %v399, 31
    %v432 = vshra.s32 %v400, 31
    %v433 = vshra.s32 %v401, 31
    %v434 = vshra.s32 %v402, 31
    %v435 = vshra.s32 %v403, 31
    %v436 = vshra.s32 %v404, 31
    %v437 = vshra.s32 %v405, 31
    %v438 = vshra.s32 %v406, 31
    %v439 = vshra.s32 %v407, 31
    %v440 = vshra.s32 %v408, 31
    %v441 = vshra.s32 %v409, 31
    %v442 = vshra.s32 %v410, 31
    %v443 = vshra.s32 %v411, 31
    %v444 = vshra.s32 %v412, 31
    %v445 = vshra.s32 %v413, 31
    %v446 = vshra.s32 %v414, 31
    %v447 = vshra.s32 %v415, 31
    %v448 = vshra.s32 %v416, 31
    %v449 = vshra.s32 %v417, 31
    %v450 = vld [vmem:[#allocation2 + $0x2] sm:$0x1]
    %v451 = vlaneseq
    %v452 = vshrl.u32 %v451, 7
    %v453 = vsub.s32 0, %v452
    %v454 = vrot.slane %v450, %v453
    %v455 = vand.u32 %v454, %v418
    %v456 = vand.u32 %v454, %v419
    %v457 = vand.u32 %v454, %v420
    %v458 = vand.u32 %v454, %v421
    %v459 = vand.u32 %v454, %v422
    %v460 = vand.u32 %v454, %v423
    %v461 = vand.u32 %v454, %v424
    %v462 = vand.u32 %v454, %v425
    %v463 = vand.u32 %v454, %v426
    %v464 = vand.u32 %v454, %v427
    %v465 = vand.u32 %v454, %v428
    %v466 = vand.u32 %v454, %v429
    %v467 = vand.u32 %v454, %v430
    %v468 = vand.u32 %v454, %v431
    %v469 = vand.u32 %v454, %v432
    %v470 = vand.u32 %v454, %v433
    %v471 = vand.u32 %v454, %v434
    %v472 = vand.u32 %v454, %v435
    %v473 = vand.u32 %v454, %v436
    %v474 = vand.u32 %v454, %v437
    %v475 = vand.u32 %v454, %v438
    %v476 = vand.u32 %v454, %v439
    %v477 = vand.u32 %v454, %v440
    %v478 = vand.u32 %v454, %v441
    %v479 = vand.u32 %v454, %v442
    %v480 = vand.u32 %v454, %v443
    %v481 = vand.u32 %v454, %v444
    %v482 = vand.u32 %v454, %v445
    %v483 = vand.u32 %v454, %v446
    %v484 = vand.u32 %v454, %v447
    %v485 = vand.u32 %v454, %v448
    %v486 = vand.u32 %v454, %v449
    %v487 = vxor.u32 %v354, %v455
    %v488 = vxor.u32 %v355, %v456
    %v489 = vxor.u32 %v356, %v457
    %v490 = vxor.u32 %v357, %v458
    %v491 = vxor.u32 %v358, %v459
    %v492 = vxor.u32 %v359, %v460
    %v493 = vxor.u32 %v360, %v461
    %v494 = vxor.u32 %v361, %v462
    %v495 = vxor.u32 %v362, %v463
    %v496 = vxor.u32 %v363, %v464
    %v497 = vxor.u32 %v364, %v465
    %v498 = vxor.u32 %v365, %v466
    %v499 = vxor.u32 %v366, %v467
    %v500 = vxor.u32 %v367, %v468
    %v501 = vxor.u32 %v368, %v469
    %v502 = vxor.u32 %v369, %v470
    %v503 = vxor.u32 %v370, %v471
    %v504 = vxor.u32 %v371, %v472
    %v505 = vxor.u32 %v372, %v473
    %v506 = vxor.u32 %v373, %v474
    %v507 = vxor.u32 %v374, %v475
    %v508 = vxor.u32 %v375, %v476
    %v509 = vxor.u32 %v376, %v477
    %v510 = vxor.u32 %v377, %v478
    %v511 = vxor.u32 %v378, %v479
    %v512 = vxor.u32 %v379, %v480
    %v513 = vxor.u32 %v380, %v481
    %v514 = vxor.u32 %v381, %v482
    %v515 = vxor.u32 %v382, %v483
    %v516 = vxor.u32 %v383, %v484
    %v517 = vxor.u32 %v384, %v485
    %v518 = vxor.u32 %v385, %v486
    %v519 = vshll.u32 %v120, 28
    %v520 = vshll.u32 %v121, 28
    %v521 = vshll.u32 %v122, 28
    %v522 = vshll.u32 %v123, 28
    %v523 = vshll.u32 %v124, 28
    %v524 = vshll.u32 %v125, 28
    %v525 = vshll.u32 %v126, 28
    %v526 = vshll.u32 %v127, 28
    %v527 = vshll.u32 %v128, 28
    %v528 = vshll.u32 %v129, 28
    %v529 = vshll.u32 %v130, 28
    %v530 = vshll.u32 %v131, 28
    %v531 = vshll.u32 %v132, 28
    %v532 = vshll.u32 %v133, 28
    %v533 = vshll.u32 %v134, 28
    %v534 = vshll.u32 %v135, 28
    %v535 = vshll.u32 %v136, 28
    %v536 = vshll.u32 %v137, 28
    %v537 = vshll.u32 %v138, 28
    %v538 = vshll.u32 %v139, 28
    %v539 = vshll.u32 %v140, 28
    %v540 = vshll.u32 %v141, 28
    %v541 = vshll.u32 %v142, 28
    %v542 = vshll.u32 %v143, 28
    %v543 = vshll.u32 %v144, 28
    %v544 = vshll.u32 %v145, 28
    %v545 = vshll.u32 %v146, 28
    %v546 = vshll.u32 %v147, 28
    %v547 = vshll.u32 %v148, 28
    %v548 = vshll.u32 %v149, 28
    %v549 = vshll.u32 %v150, 28
    %v550 = vshll.u32 %v151, 28
    %v551 = vshra.s32 %v519, 31
    %v552 = vshra.s32 %v520, 31
    %v553 = vshra.s32 %v521, 31
    %v554 = vshra.s32 %v522, 31
    %v555 = vshra.s32 %v523, 31
    %v556 = vshra.s32 %v524, 31
    %v557 = vshra.s32 %v525, 31
    %v558 = vshra.s32 %v526, 31
    %v559 = vshra.s32 %v527, 31
    %v560 = vshra.s32 %v528, 31
    %v561 = vshra.s32 %v529, 31
    %v562 = vshra.s32 %v530, 31
    %v563 = vshra.s32 %v531, 31
    %v564 = vshra.s32 %v532, 31
    %v565 = vshra.s32 %v533, 31
    %v566 = vshra.s32 %v534, 31
    %v567 = vshra.s32 %v535, 31
    %v568 = vshra.s32 %v536, 31
    %v569 = vshra.s32 %v537, 31
    %v570 = vshra.s32 %v538, 31
    %v571 = vshra.s32 %v539, 31
    %v572 = vshra.s32 %v540, 31
    %v573 = vshra.s32 %v541, 31
    %v574 = vshra.s32 %v542, 31
    %v575 = vshra.s32 %v543, 31
    %v576 = vshra.s32 %v544, 31
    %v577 = vshra.s32 %v545, 31
    %v578 = vshra.s32 %v546, 31
    %v579 = vshra.s32 %v547, 31
    %v580 = vshra.s32 %v548, 31
    %v581 = vshra.s32 %v549, 31
    %v582 = vshra.s32 %v550, 31
    %v583 = vld [vmem:[#allocation2 + $0x3] sm:$0x1]
    %v584 = vlaneseq
    %v585 = vshrl.u32 %v584, 7
    %v586 = vsub.s32 0, %v585
    %v587 = vrot.slane %v583, %v586
    %v588 = vand.u32 %v587, %v551
    %v589 = vand.u32 %v587, %v552
    %v590 = vand.u32 %v587, %v553
    %v591 = vand.u32 %v587, %v554
    %v592 = vand.u32 %v587, %v555
    %v593 = vand.u32 %v587, %v556
    %v594 = vand.u32 %v587, %v557
    %v595 = vand.u32 %v587, %v558
    %v596 = vand.u32 %v587, %v559
    %v597 = vand.u32 %v587, %v560
    %v598 = vand.u32 %v587, %v561
    %v599 = vand.u32 %v587, %v562
    %v600 = vand.u32 %v587, %v563
    %v601 = vand.u32 %v587, %v564
    %v602 = vand.u32 %v587, %v565
    %v603 = vand.u32 %v587, %v566
    %v604 = vand.u32 %v587, %v567
    %v605 = vand.u32 %v587, %v568
    %v606 = vand.u32 %v587, %v569
    %v607 = vand.u32 %v587, %v570
    %v608 = vand.u32 %v587, %v571
    %v609 = vand.u32 %v587, %v572
    %v610 = vand.u32 %v587, %v573
    %v611 = vand.u32 %v587, %v574
    %v612 = vand.u32 %v587, %v575
    %v613 = vand.u32 %v587, %v576
    %v614 = vand.u32 %v587, %v577
    %v615 = vand.u32 %v587, %v578
    %v616 = vand.u32 %v587, %v579
    %v617 = vand.u32 %v587, %v580
    %v618 = vand.u32 %v587, %v581
    %v619 = vand.u32 %v587, %v582
    %v620 = vxor.u32 %v487, %v588
    %v621 = vxor.u32 %v488, %v589
    %v622 = vxor.u32 %v489, %v590
    %v623 = vxor.u32 %v490, %v591
    %v624 = vxor.u32 %v491, %v592
    %v625 = vxor.u32 %v492, %v593
    %v626 = vxor.u32 %v493, %v594
    %v627 = vxor.u32 %v494, %v595
    %v628 = vxor.u32 %v495, %v596
    %v629 = vxor.u32 %v496, %v597
    %v630 = vxor.u32 %v497, %v598
    %v631 = vxor.u32 %v498, %v599
    %v632 = vxor.u32 %v499, %v600
    %v633 = vxor.u32 %v500, %v601
    %v634 = vxor.u32 %v501, %v602
    %v635 = vxor.u32 %v502, %v603
    %v636 = vxor.u32 %v503, %v604
    %v637 = vxor.u32 %v504, %v605
    %v638 = vxor.u32 %v505, %v606
    %v639 = vxor.u32 %v506, %v607
    %v640 = vxor.u32 %v507, %v608
    %v641 = vxor.u32 %v508, %v609
    %v642 = vxor.u32 %v509, %v610
    %v643 = vxor.u32 %v510, %v611
    %v644 = vxor.u32 %v511, %v612
    %v645 = vxor.u32 %v512, %v613
    %v646 = vxor.u32 %v513, %v614
    %v647 = vxor.u32 %v514, %v615
    %v648 = vxor.u32 %v515, %v616
    %v649 = vxor.u32 %v516, %v617
    %v650 = vxor.u32 %v517, %v618
    %v651 = vxor.u32 %v518, %v619
    %v652 = vshll.u32 %v120, 27
    %v653 = vshll.u32 %v121, 27
    %v654 = vshll.u32 %v122, 27
    %v655 = vshll.u32 %v123, 27
    %v656 = vshll.u32 %v124, 27
    %v657 = vshll.u32 %v125, 27
    %v658 = vshll.u32 %v126, 27
    %v659 = vshll.u32 %v127, 27
    %v660 = vshll.u32 %v128, 27
    %v661 = vshll.u32 %v129, 27
    %v662 = vshll.u32 %v130, 27
    %v663 = vshll.u32 %v131, 27
    %v664 = vshll.u32 %v132, 27
    %v665 = vshll.u32 %v133, 27
    %v666 = vshll.u32 %v134, 27
    %v667 = vshll.u32 %v135, 27
    %v668 = vshll.u32 %v136, 27
    %v669 = vshll.u32 %v137, 27
    %v670 = vshll.u32 %v138, 27
    %v671 = vshll.u32 %v139, 27
    %v672 = vshll.u32 %v140, 27
    %v673 = vshll.u32 %v141, 27
    %v674 = vshll.u32 %v142, 27
    %v675 = vshll.u32 %v143, 27
    %v676 = vshll.u32 %v144, 27
    %v677 = vshll.u32 %v145, 27
    %v678 = vshll.u32 %v146, 27
    %v679 = vshll.u32 %v147, 27
    %v680 = vshll.u32 %v148, 27
    %v681 = vshll.u32 %v149, 27
    %v682 = vshll.u32 %v150, 27
    %v683 = vshll.u32 %v151, 27
    %v684 = vshra.s32 %v652, 31
    %v685 = vshra.s32 %v653, 31
    %v686 = vshra.s32 %v654, 31
    %v687 = vshra.s32 %v655, 31
    %v688 = vshra.s32 %v656, 31
    %v689 = vshra.s32 %v657, 31
    %v690 = vshra.s32 %v658, 31
    %v691 = vshra.s32 %v659, 31
    %v692 = vshra.s32 %v660, 31
    %v693 = vshra.s32 %v661, 31
    %v694 = vshra.s32 %v662, 31
    %v695 = vshra.s32 %v663, 31
    %v696 = vshra.s32 %v664, 31
    %v697 = vshra.s32 %v665, 31
    %v698 = vshra.s32 %v666, 31
    %v699 = vshra.s32 %v667, 31
    %v700 = vshra.s32 %v668, 31
    %v701 = vshra.s32 %v669, 31
    %v702 = vshra.s32 %v670, 31
    %v703 = vshra.s32 %v671, 31
    %v704 = vshra.s32 %v672, 31
    %v705 = vshra.s32 %v673, 31
    %v706 = vshra.s32 %v674, 31
    %v707 = vshra.s32 %v675, 31
    %v708 = vshra.s32 %v676, 31
    %v709 = vshra.s32 %v677, 31
    %v710 = vshra.s32 %v678, 31
    %v711 = vshra.s32 %v679, 31
    %v712 = vshra.s32 %v680, 31
    %v713 = vshra.s32 %v681, 31
    %v714 = vshra.s32 %v682, 31
    %v715 = vshra.s32 %v683, 31
    %v716 = vld [vmem:[#allocation2 + $0x4] sm:$0x1]
    %v717 = vlaneseq
    %v718 = vshrl.u32 %v717, 7
    %v719 = vsub.s32 0, %v718
    %v720 = vrot.slane %v716, %v719
    %v721 = vand.u32 %v720, %v684
    %v722 = vand.u32 %v720, %v685
    %v723 = vand.u32 %v720, %v686
    %v724 = vand.u32 %v720, %v687
    %v725 = vand.u32 %v720, %v688
    %v726 = vand.u32 %v720, %v689
    %v727 = vand.u32 %v720, %v690
    %v728 = vand.u32 %v720, %v691
    %v729 = vand.u32 %v720, %v692
    %v730 = vand.u32 %v720, %v693
    %v731 = vand.u32 %v720, %v694
    %v732 = vand.u32 %v720, %v695
    %v733 = vand.u32 %v720, %v696
    %v734 = vand.u32 %v720, %v697
    %v735 = vand.u32 %v720, %v698
    %v736 = vand.u32 %v720, %v699
    %v737 = vand.u32 %v720, %v700
    %v738 = vand.u32 %v720, %v701
    %v739 = vand.u32 %v720, %v702
    %v740 = vand.u32 %v720, %v703
    %v741 = vand.u32 %v720, %v704
    %v742 = vand.u32 %v720, %v705
    %v743 = vand.u32 %v720, %v706
    %v744 = vand.u32 %v720, %v707
    %v745 = vand.u32 %v720, %v708
    %v746 = vand.u32 %v720, %v709
    %v747 = vand.u32 %v720, %v710
    %v748 = vand.u32 %v720, %v711
    %v749 = vand.u32 %v720, %v712
    %v750 = vand.u32 %v720, %v713
    %v751 = vand.u32 %v720, %v714
    %v752 = vand.u32 %v720, %v715
    %v753 = vxor.u32 %v620, %v721
    %v754 = vxor.u32 %v621, %v722
    %v755 = vxor.u32 %v622, %v723
    %v756 = vxor.u32 %v623, %v724
    %v757 = vxor.u32 %v624, %v725
    %v758 = vxor.u32 %v625, %v726
    %v759 = vxor.u32 %v626, %v727
    %v760 = vxor.u32 %v627, %v728
    %v761 = vxor.u32 %v628, %v729
    %v762 = vxor.u32 %v629, %v730
    %v763 = vxor.u32 %v630, %v731
    %v764 = vxor.u32 %v631, %v732
    %v765 = vxor.u32 %v632, %v733
    %v766 = vxor.u32 %v633, %v734
    %v767 = vxor.u32 %v634, %v735
    %v768 = vxor.u32 %v635, %v736
    %v769 = vxor.u32 %v636, %v737
    %v770 = vxor.u32 %v637, %v738
    %v771 = vxor.u32 %v638, %v739
    %v772 = vxor.u32 %v639, %v740
    %v773 = vxor.u32 %v640, %v741
    %v774 = vxor.u32 %v641, %v742
    %v775 = vxor.u32 %v642, %v743
    %v776 = vxor.u32 %v643, %v744
    %v777 = vxor.u32 %v644, %v745
    %v778 = vxor.u32 %v645, %v746
    %v779 = vxor.u32 %v646, %v747
    %v780 = vxor.u32 %v647, %v748
    %v781 = vxor.u32 %v648, %v749
    %v782 = vxor.u32 %v649, %v750
    %v783 = vxor.u32 %v650, %v751
    %v784 = vxor.u32 %v651, %v752
    %v785 = vshll.u32 %v120, 26
    %v786 = vshll.u32 %v121, 26
    %v787 = vshll.u32 %v122, 26
    %v788 = vshll.u32 %v123, 26
    %v789 = vshll.u32 %v124, 26
    %v790 = vshll.u32 %v125, 26
    %v791 = vshll.u32 %v126, 26
    %v792 = vshll.u32 %v127, 26
    %v793 = vshll.u32 %v128, 26
    %v794 = vshll.u32 %v129, 26
    %v795 = vshll.u32 %v130, 26
    %v796 = vshll.u32 %v131, 26
    %v797 = vshll.u32 %v132, 26
    %v798 = vshll.u32 %v133, 26
    %v799 = vshll.u32 %v134, 26
    %v800 = vshll.u32 %v135, 26
    %v801 = vshll.u32 %v136, 26
    %v802 = vshll.u32 %v137, 26
    %v803 = vshll.u32 %v138, 26
    %v804 = vshll.u32 %v139, 26
    %v805 = vshll.u32 %v140, 26
    %v806 = vshll.u32 %v141, 26
    %v807 = vshll.u32 %v142, 26
    %v808 = vshll.u32 %v143, 26
    %v809 = vshll.u32 %v144, 26
    %v810 = vshll.u32 %v145, 26
    %v811 = vshll.u32 %v146, 26
    %v812 = vshll.u32 %v147, 26
    %v813 = vshll.u32 %v148, 26
    %v814 = vshll.u32 %v149, 26
    %v815 = vshll.u32 %v150, 26
    %v816 = vshll.u32 %v151, 26
    %v817 = vshra.s32 %v785, 31
    %v818 = vshra.s32 %v786, 31
    %v819 = vshra.s32 %v787, 31
    %v820 = vshra.s32 %v788, 31
    %v821 = vshra.s32 %v789, 31
    %v822 = vshra.s32 %v790, 31
    %v823 = vshra.s32 %v791, 31
    %v824 = vshra.s32 %v792, 31
    %v825 = vshra.s32 %v793, 31
    %v826 = vshra.s32 %v794, 31
    %v827 = vshra.s32 %v795, 31
    %v828 = vshra.s32 %v796, 31
    %v829 = vshra.s32 %v797, 31
    %v830 = vshra.s32 %v798, 31
    %v831 = vshra.s32 %v799, 31
    %v832 = vshra.s32 %v800, 31
    %v833 = vshra.s32 %v801, 31
    %v834 = vshra.s32 %v802, 31
    %v835 = vshra.s32 %v803, 31
    %v836 = vshra.s32 %v804, 31
    %v837 = vshra.s32 %v805, 31
    %v838 = vshra.s32 %v806, 31
    %v839 = vshra.s32 %v807, 31
    %v840 = vshra.s32 %v808, 31
    %v841 = vshra.s32 %v809, 31
    %v842 = vshra.s32 %v810, 31
    %v843 = vshra.s32 %v811, 31
    %v844 = vshra.s32 %v812, 31
    %v845 = vshra.s32 %v813, 31
    %v846 = vshra.s32 %v814, 31
    %v847 = vshra.s32 %v815, 31
    %v848 = vshra.s32 %v816, 31
    %v849 = vld [vmem:[#allocation2 + $0x5] sm:$0x1]
    %v850 = vlaneseq
    %v851 = vshrl.u32 %v850, 7
    %v852 = vsub.s32 0, %v851
    %v853 = vrot.slane %v849, %v852
    %v854 = vand.u32 %v853, %v817
    %v855 = vand.u32 %v853, %v818
    %v856 = vand.u32 %v853, %v819
    %v857 = vand.u32 %v853, %v820
    %v858 = vand.u32 %v853, %v821
    %v859 = vand.u32 %v853, %v822
    %v860 = vand.u32 %v853, %v823
    %v861 = vand.u32 %v853, %v824
    %v862 = vand.u32 %v853, %v825
    %v863 = vand.u32 %v853, %v826
    %v864 = vand.u32 %v853, %v827
    %v865 = vand.u32 %v853, %v828
    %v866 = vand.u32 %v853, %v829
    %v867 = vand.u32 %v853, %v830
    %v868 = vand.u32 %v853, %v831
    %v869 = vand.u32 %v853, %v832
    %v870 = vand.u32 %v853, %v833
    %v871 = vand.u32 %v853, %v834
    %v872 = vand.u32 %v853, %v835
    %v873 = vand.u32 %v853, %v836
    %v874 = vand.u32 %v853, %v837
    %v875 = vand.u32 %v853, %v838
    %v876 = vand.u32 %v853, %v839
    %v877 = vand.u32 %v853, %v840
    %v878 = vand.u32 %v853, %v841
    %v879 = vand.u32 %v853, %v842
    %v880 = vand.u32 %v853, %v843
    %v881 = vand.u32 %v853, %v844
    %v882 = vand.u32 %v853, %v845
    %v883 = vand.u32 %v853, %v846
    %v884 = vand.u32 %v853, %v847
    %v885 = vand.u32 %v853, %v848
    %v886 = vxor.u32 %v753, %v854
    %v887 = vxor.u32 %v754, %v855
    %v888 = vxor.u32 %v755, %v856
    %v889 = vxor.u32 %v756, %v857
    %v890 = vxor.u32 %v757, %v858
    %v891 = vxor.u32 %v758, %v859
    %v892 = vxor.u32 %v759, %v860
    %v893 = vxor.u32 %v760, %v861
    %v894 = vxor.u32 %v761, %v862
    %v895 = vxor.u32 %v762, %v863
    %v896 = vxor.u32 %v763, %v864
    %v897 = vxor.u32 %v764, %v865
    %v898 = vxor.u32 %v765, %v866
    %v899 = vxor.u32 %v766, %v867
    %v900 = vxor.u32 %v767, %v868
    %v901 = vxor.u32 %v768, %v869
    %v902 = vxor.u32 %v769, %v870
    %v903 = vxor.u32 %v770, %v871
    %v904 = vxor.u32 %v771, %v872
    %v905 = vxor.u32 %v772, %v873
    %v906 = vxor.u32 %v773, %v874
    %v907 = vxor.u32 %v774, %v875
    %v908 = vxor.u32 %v775, %v876
    %v909 = vxor.u32 %v776, %v877
    %v910 = vxor.u32 %v777, %v878
    %v911 = vxor.u32 %v778, %v879
    %v912 = vxor.u32 %v779, %v880
    %v913 = vxor.u32 %v780, %v881
    %v914 = vxor.u32 %v781, %v882
    %v915 = vxor.u32 %v782, %v883
    %v916 = vxor.u32 %v783, %v884
    %v917 = vxor.u32 %v784, %v885
    %v918 = vshll.u32 %v120, 25
    %v919 = vshll.u32 %v121, 25
    %v920 = vshll.u32 %v122, 25
    %v921 = vshll.u32 %v123, 25
    %v922 = vshll.u32 %v124, 25
    %v923 = vshll.u32 %v125, 25
    %v924 = vshll.u32 %v126, 25
    %v925 = vshll.u32 %v127, 25
    %v926 = vshll.u32 %v128, 25
    %v927 = vshll.u32 %v129, 25
    %v928 = vshll.u32 %v130, 25
    %v929 = vshll.u32 %v131, 25
    %v930 = vshll.u32 %v132, 25
    %v931 = vshll.u32 %v133, 25
    %v932 = vshll.u32 %v134, 25
    %v933 = vshll.u32 %v135, 25
    %v934 = vshll.u32 %v136, 25
    %v935 = vshll.u32 %v137, 25
    %v936 = vshll.u32 %v138, 25
    %v937 = vshll.u32 %v139, 25
    %v938 = vshll.u32 %v140, 25
    %v939 = vshll.u32 %v141, 25
    %v940 = vshll.u32 %v142, 25
    %v941 = vshll.u32 %v143, 25
    %v942 = vshll.u32 %v144, 25
    %v943 = vshll.u32 %v145, 25
    %v944 = vshll.u32 %v146, 25
    %v945 = vshll.u32 %v147, 25
    %v946 = vshll.u32 %v148, 25
    %v947 = vshll.u32 %v149, 25
    %v948 = vshll.u32 %v150, 25
    %v949 = vshll.u32 %v151, 25
    %v950 = vshra.s32 %v918, 31
    %v951 = vshra.s32 %v919, 31
    %v952 = vshra.s32 %v920, 31
    %v953 = vshra.s32 %v921, 31
    %v954 = vshra.s32 %v922, 31
    %v955 = vshra.s32 %v923, 31
    %v956 = vshra.s32 %v924, 31
    %v957 = vshra.s32 %v925, 31
    %v958 = vshra.s32 %v926, 31
    %v959 = vshra.s32 %v927, 31
    %v960 = vshra.s32 %v928, 31
    %v961 = vshra.s32 %v929, 31
    %v962 = vshra.s32 %v930, 31
    %v963 = vshra.s32 %v931, 31
    %v964 = vshra.s32 %v932, 31
    %v965 = vshra.s32 %v933, 31
    %v966 = vshra.s32 %v934, 31
    %v967 = vshra.s32 %v935, 31
    %v968 = vshra.s32 %v936, 31
    %v969 = vshra.s32 %v937, 31
    %v970 = vshra.s32 %v938, 31
    %v971 = vshra.s32 %v939, 31
    %v972 = vshra.s32 %v940, 31
    %v973 = vshra.s32 %v941, 31
    %v974 = vshra.s32 %v942, 31
    %v975 = vshra.s32 %v943, 31
    %v976 = vshra.s32 %v944, 31
    %v977 = vshra.s32 %v945, 31
    %v978 = vshra.s32 %v946, 31
    %v979 = vshra.s32 %v947, 31
    %v980 = vshra.s32 %v948, 31
    %v981 = vshra.s32 %v949, 31
    %v982 = vld [vmem:[#allocation2 + $0x6] sm:$0x1]
    %v983 = vlaneseq
    %v984 = vshrl.u32 %v983, 7
    %v985 = vsub.s32 0, %v984
    %v986 = vrot.slane %v982, %v985
    %v987 = vand.u32 %v986, %v950
    %v988 = vand.u32 %v986, %v951
    %v989 = vand.u32 %v986, %v952
    %v990 = vand.u32 %v986, %v953
    %v991 = vand.u32 %v986, %v954
    %v992 = vand.u32 %v986, %v955
    %v993 = vand.u32 %v986, %v956
    %v994 = vand.u32 %v986, %v957
    %v995 = vand.u32 %v986, %v958
    %v996 = vand.u32 %v986, %v959
    %v997 = vand.u32 %v986, %v960
    %v998 = vand.u32 %v986, %v961
    %v999 = vand.u32 %v986, %v962
    %v1000 = vand.u32 %v986, %v963
    %v1001 = vand.u32 %v986, %v964
    %v1002 = vand.u32 %v986, %v965
    %v1003 = vand.u32 %v986, %v966
    %v1004 = vand.u32 %v986, %v967
    %v1005 = vand.u32 %v986, %v968
    %v1006 = vand.u32 %v986, %v969
    %v1007 = vand.u32 %v986, %v970
    %v1008 = vand.u32 %v986, %v971
    %v1009 = vand.u32 %v986, %v972
    %v1010 = vand.u32 %v986, %v973
    %v1011 = vand.u32 %v986, %v974
    %v1012 = vand.u32 %v986, %v975
    %v1013 = vand.u32 %v986, %v976
    %v1014 = vand.u32 %v986, %v977
    %v1015 = vand.u32 %v986, %v978
    %v1016 = vand.u32 %v986, %v979
    %v1017 = vand.u32 %v986, %v980
    %v1018 = vand.u32 %v986, %v981
    %v1019 = vxor.u32 %v886, %v987
    %v1020 = vxor.u32 %v887, %v988
    %v1021 = vxor.u32 %v888, %v989
    %v1022 = vxor.u32 %v889, %v990
    %v1023 = vxor.u32 %v890, %v991
    %v1024 = vxor.u32 %v891, %v992
    %v1025 = vxor.u32 %v892, %v993
    %v1026 = vxor.u32 %v893, %v994
    %v1027 = vxor.u32 %v894, %v995
    %v1028 = vxor.u32 %v895, %v996
    %v1029 = vxor.u32 %v896, %v997
    %v1030 = vxor.u32 %v897, %v998
    %v1031 = vxor.u32 %v898, %v999
    %v1032 = vxor.u32 %v899, %v1000
    %v1033 = vxor.u32 %v900, %v1001
    %v1034 = vxor.u32 %v901, %v1002
    %v1035 = vxor.u32 %v902, %v1003
    %v1036 = vxor.u32 %v903, %v1004
    %v1037 = vxor.u32 %v904, %v1005
    %v1038 = vxor.u32 %v905, %v1006
    %v1039 = vxor.u32 %v906, %v1007
    %v1040 = vxor.u32 %v907, %v1008
    %v1041 = vxor.u32 %v908, %v1009
    %v1042 = vxor.u32 %v909, %v1010
    %v1043 = vxor.u32 %v910, %v1011
    %v1044 = vxor.u32 %v911, %v1012
    %v1045 = vxor.u32 %v912, %v1013
    %v1046 = vxor.u32 %v913, %v1014
    %v1047 = vxor.u32 %v914, %v1015
    %v1048 = vxor.u32 %v915, %v1016
    %v1049 = vxor.u32 %v916, %v1017
    %v1050 = vxor.u32 %v917, %v1018
    %v1051 = vshll.u32 %v120, 24
    %v1052 = vshll.u32 %v121, 24
    %v1053 = vshll.u32 %v122, 24
    %v1054 = vshll.u32 %v123, 24
    %v1055 = vshll.u32 %v124, 24
    %v1056 = vshll.u32 %v125, 24
    %v1057 = vshll.u32 %v126, 24
    %v1058 = vshll.u32 %v127, 24
    %v1059 = vshll.u32 %v128, 24
    %v1060 = vshll.u32 %v129, 24
    %v1061 = vshll.u32 %v130, 24
    %v1062 = vshll.u32 %v131, 24
    %v1063 = vshll.u32 %v132, 24
    %v1064 = vshll.u32 %v133, 24
    %v1065 = vshll.u32 %v134, 24
    %v1066 = vshll.u32 %v135, 24
    %v1067 = vshll.u32 %v136, 24
    %v1068 = vshll.u32 %v137, 24
    %v1069 = vshll.u32 %v138, 24
    %v1070 = vshll.u32 %v139, 24
    %v1071 = vshll.u32 %v140, 24
    %v1072 = vshll.u32 %v141, 24
    %v1073 = vshll.u32 %v142, 24
    %v1074 = vshll.u32 %v143, 24
    %v1075 = vshll.u32 %v144, 24
    %v1076 = vshll.u32 %v145, 24
    %v1077 = vshll.u32 %v146, 24
    %v1078 = vshll.u32 %v147, 24
    %v1079 = vshll.u32 %v148, 24
    %v1080 = vshll.u32 %v149, 24
    %v1081 = vshll.u32 %v150, 24
    %v1082 = vshll.u32 %v151, 24
    %v1083 = vshra.s32 %v1051, 31
    %v1084 = vshra.s32 %v1052, 31
    %v1085 = vshra.s32 %v1053, 31
    %v1086 = vshra.s32 %v1054, 31
    %v1087 = vshra.s32 %v1055, 31
    %v1088 = vshra.s32 %v1056, 31
    %v1089 = vshra.s32 %v1057, 31
    %v1090 = vshra.s32 %v1058, 31
    %v1091 = vshra.s32 %v1059, 31
    %v1092 = vshra.s32 %v1060, 31
    %v1093 = vshra.s32 %v1061, 31
    %v1094 = vshra.s32 %v1062, 31
    %v1095 = vshra.s32 %v1063, 31
    %v1096 = vshra.s32 %v1064, 31
    %v1097 = vshra.s32 %v1065, 31
    %v1098 = vshra.s32 %v1066, 31
    %v1099 = vshra.s32 %v1067, 31
    %v1100 = vshra.s32 %v1068, 31
    %v1101 = vshra.s32 %v1069, 31
    %v1102 = vshra.s32 %v1070, 31
    %v1103 = vshra.s32 %v1071, 31
    %v1104 = vshra.s32 %v1072, 31
    %v1105 = vshra.s32 %v1073, 31
    %v1106 = vshra.s32 %v1074, 31
    %v1107 = vshra.s32 %v1075, 31
    %v1108 = vshra.s32 %v1076, 31
    %v1109 = vshra.s32 %v1077, 31
    %v1110 = vshra.s32 %v1078, 31
    %v1111 = vshra.s32 %v1079, 31
    %v1112 = vshra.s32 %v1080, 31
    %v1113 = vshra.s32 %v1081, 31
    %v1114 = vshra.s32 %v1082, 31
    %v1115 = vld [vmem:[#allocation2 + $0x7] sm:$0x1]
    %v1116 = vlaneseq
    %v1117 = vshrl.u32 %v1116, 7
    %v1118 = vsub.s32 0, %v1117
    %v1119 = vrot.slane %v1115, %v1118
    %v1120 = vand.u32 %v1119, %v1083
    %v1121 = vand.u32 %v1119, %v1084
    %v1122 = vand.u32 %v1119, %v1085
    %v1123 = vand.u32 %v1119, %v1086
    %v1124 = vand.u32 %v1119, %v1087
    %v1125 = vand.u32 %v1119, %v1088
    %v1126 = vand.u32 %v1119, %v1089
    %v1127 = vand.u32 %v1119, %v1090
    %v1128 = vand.u32 %v1119, %v1091
    %v1129 = vand.u32 %v1119, %v1092
    %v1130 = vand.u32 %v1119, %v1093
    %v1131 = vand.u32 %v1119, %v1094
    %v1132 = vand.u32 %v1119, %v1095
    %v1133 = vand.u32 %v1119, %v1096
    %v1134 = vand.u32 %v1119, %v1097
    %v1135 = vand.u32 %v1119, %v1098
    %v1136 = vand.u32 %v1119, %v1099
    %v1137 = vand.u32 %v1119, %v1100
    %v1138 = vand.u32 %v1119, %v1101
    %v1139 = vand.u32 %v1119, %v1102
    %v1140 = vand.u32 %v1119, %v1103
    %v1141 = vand.u32 %v1119, %v1104
    %v1142 = vand.u32 %v1119, %v1105
    %v1143 = vand.u32 %v1119, %v1106
    %v1144 = vand.u32 %v1119, %v1107
    %v1145 = vand.u32 %v1119, %v1108
    %v1146 = vand.u32 %v1119, %v1109
    %v1147 = vand.u32 %v1119, %v1110
    %v1148 = vand.u32 %v1119, %v1111
    %v1149 = vand.u32 %v1119, %v1112
    %v1150 = vand.u32 %v1119, %v1113
    %v1151 = vand.u32 %v1119, %v1114
    %v1152 = vxor.u32 %v1019, %v1120
    %v1153 = vxor.u32 %v1020, %v1121
    %v1154 = vxor.u32 %v1021, %v1122
    %v1155 = vxor.u32 %v1022, %v1123
    %v1156 = vxor.u32 %v1023, %v1124
    %v1157 = vxor.u32 %v1024, %v1125
    %v1158 = vxor.u32 %v1025, %v1126
    %v1159 = vxor.u32 %v1026, %v1127
    %v1160 = vxor.u32 %v1027, %v1128
    %v1161 = vxor.u32 %v1028, %v1129
    %v1162 = vxor.u32 %v1029, %v1130
    %v1163 = vxor.u32 %v1030, %v1131
    %v1164 = vxor.u32 %v1031, %v1132
    %v1165 = vxor.u32 %v1032, %v1133
    %v1166 = vxor.u32 %v1033, %v1134
    %v1167 = vxor.u32 %v1034, %v1135
    %v1168 = vxor.u32 %v1035, %v1136
    %v1169 = vxor.u32 %v1036, %v1137
    %v1170 = vxor.u32 %v1037, %v1138
    %v1171 = vxor.u32 %v1038, %v1139
    %v1172 = vxor.u32 %v1039, %v1140
    %v1173 = vxor.u32 %v1040, %v1141
    %v1174 = vxor.u32 %v1041, %v1142
    %v1175 = vxor.u32 %v1042, %v1143
    %v1176 = vxor.u32 %v1043, %v1144
    %v1177 = vxor.u32 %v1044, %v1145
    %v1178 = vxor.u32 %v1045, %v1146
    %v1179 = vxor.u32 %v1046, %v1147
    %v1180 = vxor.u32 %v1047, %v1148
    %v1181 = vxor.u32 %v1048, %v1149
    %v1182 = vxor.u32 %v1049, %v1150
    %v1183 = vxor.u32 %v1050, %v1151
    %v1184 = vcvt.s32.f32 %v1152
    %v1185 = vcvt.s32.f32 %v1153
    %v1186 = vcvt.s32.f32 %v1154
    %v1187 = vcvt.s32.f32 %v1155
    %v1188 = vcvt.s32.f32 %v1156
    %v1189 = vcvt.s32.f32 %v1157
    %v1190 = vcvt.s32.f32 %v1158
    %v1191 = vcvt.s32.f32 %v1159
    %v1192 = vcvt.s32.f32 %v1160
    %v1193 = vcvt.s32.f32 %v1161
    %v1194 = vcvt.s32.f32 %v1162
    %v1195 = vcvt.s32.f32 %v1163
    %v1196 = vcvt.s32.f32 %v1164
    %v1197 = vcvt.s32.f32 %v1165
    %v1198 = vcvt.s32.f32 %v1166
    %v1199 = vcvt.s32.f32 %v1167
    %v1200 = vcvt.s32.f32 %v1168
    %v1201 = vcvt.s32.f32 %v1169
    %v1202 = vcvt.s32.f32 %v1170
    %v1203 = vcvt.s32.f32 %v1171
    %v1204 = vcvt.s32.f32 %v1172
    %v1205 = vcvt.s32.f32 %v1173
    %v1206 = vcvt.s32.f32 %v1174
    %v1207 = vcvt.s32.f32 %v1175
    %v1208 = vcvt.s32.f32 %v1176
    %v1209 = vcvt.s32.f32 %v1177
    %v1210 = vcvt.s32.f32 %v1178
    %v1211 = vcvt.s32.f32 %v1179
    %v1212 = vcvt.s32.f32 %v1180
    %v1213 = vcvt.s32.f32 %v1181
    %v1214 = vcvt.s32.f32 %v1182
    %v1215 = vcvt.s32.f32 %v1183
    %1216 = vst [vmem:[#allocation5] sm:$0xff] %v1184
    %1217 = vst [vmem:[#allocation5 + $0x8] sm:$0xff] %v1185
    %1218 = vst [vmem:[#allocation5 + $0x10] sm:$0xff] %v1186
    %1219 = vst [vmem:[#allocation5 + $0x18] sm:$0xff] %v1187
    %1220 = vst [vmem:[#allocation5 + $0x20] sm:$0xff] %v1188
    %1221 = vst [vmem:[#allocation5 + $0x28] sm:$0xff] %v1189
    %1222 = vst [vmem:[#allocation5 + $0x30] sm:$0xff] %v1190
    %1223 = vst [vmem:[#allocation5 + $0x38] sm:$0xff] %v1191
    %1224 = vst [vmem:[#allocation5 + $0x40] sm:$0xff] %v1192
    %1225 = vst [vmem:[#allocation5 + $0x48] sm:$0xff] %v1193
    %1226 = vst [vmem:[#allocation5 + $0x50] sm:$0xff] %v1194
    %1227 = vst [vmem:[#allocation5 + $0x58] sm:$0xff] %v1195
    %1228 = vst [vmem:[#allocation5 + $0x60] sm:$0xff] %v1196
    %1229 = vst [vmem:[#allocation5 + $0x68] sm:$0xff] %v1197
    %1230 = vst [vmem:[#allocation5 + $0x70] sm:$0xff] %v1198
    %1231 = vst [vmem:[#allocation5 + $0x78] sm:$0xff] %v1199
    %1232 = vst [vmem:[#allocation5 + $0x80] sm:$0xff] %v1200
    %1233 = vst [vmem:[#allocation5 + $0x88] sm:$0xff] %v1201
    %1234 = vst [vmem:[#allocation5 + $0x90] sm:$0xff] %v1202
    %1235 = vst [vmem:[#allocation5 + $0x98] sm:$0xff] %v1203
    %1236 = vst [vmem:[#allocation5 + $0xa0] sm:$0xff] %v1204
    %1237 = vst [vmem:[#allocation5 + $0xa8] sm:$0xff] %v1205
    %1238 = vst [vmem:[#allocation5 + $0xb0] sm:$0xff] %v1206
    %1239 = vst [vmem:[#allocation5 + $0xb8] sm:$0xff] %v1207
    %1240 = vst [vmem:[#allocation5 + $0xc0] sm:$0xff] %v1208
    %1241 = vst [vmem:[#allocation5 + $0xc8] sm:$0xff] %v1209
    %1242 = vst [vmem:[#allocation5 + $0xd0] sm:$0xff] %v1210
    %1243 = vst [vmem:[#allocation5 + $0xd8] sm:$0xff] %v1211
    %1244 = vst [vmem:[#allocation5 + $0xe0] sm:$0xff] %v1212
    %1245 = vst [vmem:[#allocation5 + $0xe8] sm:$0xff] %v1213
    %1246 = vst [vmem:[#allocation5 + $0xf0] sm:$0xff] %v1214
    %1247 = vst [vmem:[#allocation5 + $0xf8] sm:$0xff] %v1215
    // Predicated region
    $region10: #{tpu_custom_call.1} parent=1 // pred_check
      _
    $region11: #{tpu_custom_call.1} parent=1 // pred_check_branch
      %1249 = sbr.rel (0) target = $region13
    $region12: #{tpu_custom_call.1} parent=1 // pred_region
      %s1251 = ssub.s32 4096, 4096
      %1252 = vsyncadd [#allocation4], %s1251
      %s1253 = sshll.u32 [#allocation5], 4
      %s1254 = int_to_ptr.vmem [resolvable:$true] %s1253
      %1259 = dma.vmem_to_hbm [thread:$0]  %s1254, 4096, %s1, [#allocation4], 128, 128, 8
    $region13: #{tpu_custom_call.1} parent=1 // pred_fallthru
      _
    // Predicated region
    $region14: #{tpu_custom_call.1} parent=1 // pred_check
      _
    $region15: #{tpu_custom_call.1} parent=1 // pred_check_branch
      %1261 = sbr.rel (0) target = $region17
    $region16: #{tpu_custom_call.1} parent=1 // pred_region
      %1262 = dma.done [#allocation4], 4096
    $region17: #{tpu_custom_call.1} parent=1 // pred_fallthru
      _
    %1263 = vsyncpa [#allocation3], 1
    %1264 = vsyncpa [#allocation4], 1

</llo_original>
